<compile_context>
chip_gen: v7x
topology: tpu7x:2x2x1
jax: 0.10.0
libtpu: 0.0.40
codegen_flags: <defaults>
</compile_context>

<pallas_src>
import jax
import jax.numpy as jnp
from jax.experimental import pallas as pl
from jax.experimental.pallas import tpu as pltpu


def _se_kernel(x1_ref, x2_ref, w1a_ref, w1b_ref, b1_ref, w2_ref, b2_ref, o_ref):
    # x1_ref / x2_ref / o_ref : (Bt, C, HWp)   HWp = HW padded to a 128 multiple
    # w1a_ref / w1b_ref       : (C, hidden)    first 1x1 conv, pre-split over
    #                                          [x1 | x2], pre-transposed, with
    #                                          the 1/HW pooling scale folded in
    # b1_ref                  : (1, hidden)
    # w2_ref                  : (hidden, C)    second 1x1 conv, pre-transposed
    # b2_ref                  : (1, C)
    x1 = x1_ref[...].astype(jnp.float32)
    x2 = x2_ref[...].astype(jnp.float32)

    # AdaptiveAvgPool2d(1): lane-axis sum (the 1/HW scale lives in w1a/w1b).
    p1 = jnp.sum(x1, axis=-1)                                     # (Bt, C)
    p2 = jnp.sum(x2, axis=-1)                                     # (Bt, C)

    # Conv2d(2C -> hidden, 1x1) + ReLU: two small MXU matmuls, no pooled concat.
    h = (jnp.dot(p1, w1a_ref[...], preferred_element_type=jnp.float32)
         + jnp.dot(p2, w1b_ref[...], preferred_element_type=jnp.float32)
         + b1_ref[...])                                           # (Bt, hidden)
    h = jnp.maximum(h, 0.0)

    # Conv2d(hidden -> C, 1x1) + Sigmoid.
    logits = jnp.dot(h, w2_ref[...], preferred_element_type=jnp.float32) + b2_ref[...]
    gate = jax.nn.sigmoid(logits)                                 # (Bt, C)

    # Gated blend, single full-width multiply: x1*w + x2*(1-w) == x2 + w*(x1-x2).
    o_ref[...] = (x2 + gate[:, :, None] * (x1 - x2)).astype(o_ref.dtype)


# In-kernel f32 temporaries (x1/x2 upcasts + blend temp), conservative count.
_F32_TEMP_TILES = 3


def _vmem_limit_bytes():
    """Scoped-VMEM limit: ~3/4 of physical VMEM, capped, with a v7x-safe fallback."""
    try:
        cap = int(pltpu.get_tpu_info().vmem_capacity_bytes)
        return max(16 << 20, min(cap * 3 // 4, 96 << 20))
    except Exception:
        return 48 << 20   # under v7x's 64 MiB per-TC VMEM; fine on v5e/v6e (128 MiB)


def _pick_batch_tile(B, C, HW, itemsize, vmem_limit):
    """Largest batch tile whose live VMEM (2 inputs + 1 output double-buffered,
    plus in-kernel f32 temporaries) stays inside ~2/3 of the scoped limit.
    When more than one grid step is needed, the step count is rounded even so
    v7x's two TensorCores get balanced work.  Returns (bt, padded_batch)."""
    budget = vmem_limit * 2 // 3
    per_batch = C * HW * (6 * itemsize + _F32_TEMP_TILES * 4)
    bt = max(1, budget // per_batch)
    if bt >= B:
        return B, B                       # whole batch resident, single step
    steps = -(-B // bt)
    if steps % 2:
        steps += 1                        # even split across 2 TCs (v7x megacore)
    bt = -(-B // steps)
    return bt, steps * bt


def se_block_pallas(x1, x2, w1, b1, w2, b2):
    """x1, x2: (B, C, H, W).  w1: (hidden, 2C), b1: (hidden,),
    w2: (C, hidden), b2: (C,).  Returns (B, C, H, W) in x1.dtype
    (pass bf16 x1/x2 for the bandwidth-bound fast path; math stays f32)."""
    B, C, H, W = x1.shape
    HW = H * W
    hidden = w1.shape[0]
    assert w1.shape == (hidden, 2 * C) and w2.shape == (C, hidden)
    assert b1.shape == (hidden,) and b2.shape == (C,)

    # Host-side weight prep: split W1 over the [x1 | x2] halves, transpose for
    # `pooled @ W` on the MXU, fold the 1/HW pooling scale into W1, keep f32.
    w1f = w1.astype(jnp.float32)
    w1a = (w1f[:, :C] * (1.0 / HW)).T          # (C, hidden)  acts on pooled(x1)
    w1b = (w1f[:, C:] * (1.0 / HW)).T          # (C, hidden)  acts on pooled(x2)
    b1r = b1.astype(jnp.float32).reshape(1, hidden)
    w2t = w2.astype(jnp.float32).T             # (hidden, C)
    b2r = b2.astype(jnp.float32).reshape(1, C)

    # Flatten spatial and pad to a multiple of 128 so output stores are
    # lane-dense (unmasked vst).  Zero pad columns do not change the pooled
    # sum because the 1/HW scale above uses the true HW.
    hwp = -(-HW // 128) * 128
    x1f = x1.reshape(B, C, HW)
    x2f = x2.reshape(B, C, HW)
    if hwp != HW:
        x1f = jnp.pad(x1f, ((0, 0), (0, 0), (0, hwp - HW)))
        x2f = jnp.pad(x2f, ((0, 0), (0, 0), (0, hwp - HW)))

    vmem_limit = _vmem_limit_bytes()
    bt, b_pad = _pick_batch_tile(B, C, hwp, x1.dtype.itemsize, vmem_limit)
    if b_pad != B:
        x1f = jnp.pad(x1f, ((0, b_pad - B), (0, 0), (0, 0)))
        x2f = jnp.pad(x2f, ((0, b_pad - B), (0, 0), (0, 0)))
    grid = (b_pad // bt,)
    # TODO(synk): if a single (1, C, HW) slab ever exceeds the VMEM budget
    # (huge feature maps on v7x), add a two-pass fallback: pool/gate pass tiled
    # over HW with an f32 accumulator + pl.when finalize, then a blend pass.

    io_block = pl.BlockSpec((bt, C, hwp), lambda b: (b, 0, 0))
    full2d = lambda b: (0, 0)

    out = pl.pallas_call(
        _se_kernel,
        out_shape=jax.ShapeDtypeStruct((b_pad, C, hwp), x1.dtype),
        grid_spec=pltpu.PrefetchScalarGridSpec(
            num_scalar_prefetch=0,
            grid=grid,
            in_specs=[
                io_block,                               # x1
                io_block,                               # x2
                pl.BlockSpec((C, hidden), full2d),      # W1 half for pooled(x1)
                pl.BlockSpec((C, hidden), full2d),      # W1 half for pooled(x2)
                pl.BlockSpec((1, hidden), full2d),      # b1
                pl.BlockSpec((hidden, C), full2d),      # W2 (transposed)
                pl.BlockSpec((1, C), full2d),           # b2
            ],
            out_specs=pl.BlockSpec((bt, C, hwp), lambda b: (b, 0, 0)),
        ),
        compiler_params=pltpu.CompilerParams(
            dimension_semantics=("parallel",),
            vmem_limit_bytes=vmem_limit),
    )(x1f, x2f, w1a, w1b, b1r, w2t, b2r)

    return out[:B, :, :HW].reshape(B, C, H, W)


def se_block_ref(x1, x2, w1, b1, w2, b2):
    """Pure-JAX reference mirroring the PyTorch module (highest-precision dots)."""
    combined = jnp.concatenate([x1, x2], axis=1)                     # (B, 2C, H, W)
    pooled = jnp.mean(combined, axis=(2, 3))                         # (B, 2C)
    h = jnp.maximum(jnp.dot(pooled, w1.T, precision="highest") + b1, 0.0)
    w = jax.nn.sigmoid(jnp.dot(h, w2.T, precision="highest") + b2)   # (B, C)
    w = w[:, :, None, None]
    return x1 * w + x2 * (1.0 - w)


if __name__ == "__main__":
    # channel = 32, reduction = 8 -> hidden = 4; per-branch channels C = 16.
    B, C, H, W = 2, 16, 16, 16
    channel = 2 * C
    reduction = 8
    hidden = channel // reduction

    key = jax.random.PRNGKey(0)
    k1, k2, k3, k4, k5, k6 = jax.random.split(key, 6)

    x1 = jax.random.normal(k1, (B, C, H, W), dtype=jnp.float32)
    x2 = jax.random.normal(k2, (B, C, H, W), dtype=jnp.float32)

    # Conv2d(channel, channel//reduction, 1): weight (hidden, 2C), bias (hidden,)
    w1 = jax.random.normal(k3, (hidden, channel), dtype=jnp.float32) * 0.2
    b1 = jax.random.normal(k4, (hidden,), dtype=jnp.float32) * 0.1
    # Conv2d(channel//reduction, channel//2, 1): weight (C, hidden), bias (C,)
    w2 = jax.random.normal(k5, (C, hidden), dtype=jnp.float32) * 0.2
    b2 = jax.random.normal(k6, (C,), dtype=jnp.float32) * 0.1

    # --- f32 I/O check.  Tolerance covers default-precision MXU rounding of the
    # tiny squeeze-MLP matmuls (the data-path blend itself is exact f32).
    out = jax.block_until_ready(se_block_pallas(x1, x2, w1, b1, w2, b2))
    ref = se_block_ref(x1, x2, w1, b1, w2, b2)
    assert out.shape == (B, C, H, W)
    assert jnp.allclose(out, ref, atol=2e-2, rtol=2e-2), "f32 mismatch vs reference"

    # --- bf16 I/O check (the recommended HBM-bandwidth configuration): inputs
    # and output stored as bf16, internal pooling/MLP/blend still f32.
    x1b = x1.astype(jnp.bfloat16)
    x2b = x2.astype(jnp.bfloat16)
    out_bf = jax.block_until_ready(se_block_pallas(x1b, x2b, w1, b1, w2, b2))
    ref_bf = se_block_ref(x1b.astype(jnp.float32), x2b.astype(jnp.float32),
                          w1, b1, w2, b2)
    assert out_bf.dtype == jnp.bfloat16
    assert jnp.allclose(out_bf.astype(jnp.float32), ref_bf, atol=5e-2, rtol=5e-2), \
        "bf16 mismatch vs reference"

    print("KERNEL_OK")
</pallas_src>

<mosaic_0001>
module attributes {stable_mosaic.version = 11 : i64} {
  func.func @_se_kernel(%arg0: i32, %arg1: memref<2x16x256xf32, #tpu.memory_space<vmem>>, %arg2: memref<2x16x256xf32, #tpu.memory_space<vmem>>, %arg3: memref<16x4xf32, #tpu.memory_space<vmem>>, %arg4: memref<16x4xf32, #tpu.memory_space<vmem>>, %arg5: memref<1x4xf32, #tpu.memory_space<vmem>>, %arg6: memref<4x16xf32, #tpu.memory_space<vmem>>, %arg7: memref<1x16xf32, #tpu.memory_space<vmem>>, %arg8: memref<2x16x256xf32, #tpu.memory_space<vmem>>) attributes {dimension_semantics = [#tpu.dimension_semantics<parallel>], iteration_bounds = array<i64: 1>, scalar_prefetch = 0 : i64, scratch_operands = 0 : i64, tpu.core_type = #tpu.core_type<tc>, window_params = [{transform_indices = @transform_0, window_bounds = array<i64: 2, 16, 256>}, {transform_indices = @transform_1, window_bounds = array<i64: 2, 16, 256>}, {pipeline_mode = #tpu.pipeline_mode<synchronous>, transform_indices = @transform_2, window_bounds = array<i64: 16, 4>}, {pipeline_mode = #tpu.pipeline_mode<synchronous>, transform_indices = @transform_3, window_bounds = array<i64: 16, 4>}, {pipeline_mode = #tpu.pipeline_mode<synchronous>, transform_indices = @transform_4, window_bounds = array<i64: 1, 4>}, {pipeline_mode = #tpu.pipeline_mode<synchronous>, transform_indices = @transform_5, window_bounds = array<i64: 4, 16>}, {pipeline_mode = #tpu.pipeline_mode<synchronous>, transform_indices = @transform_6, window_bounds = array<i64: 1, 16>}, {transform_indices = @transform_7, window_bounds = array<i64: 2, 16, 256>}]} {
    %c0 = arith.constant 0 : index
    %c0_0 = arith.constant 0 : index
    %c0_1 = arith.constant 0 : index
    %0 = vector.load %arg1[%c0, %c0_0, %c0_1] : memref<2x16x256xf32, #tpu.memory_space<vmem>>, vector<2x16x256xf32>
    %c0_2 = arith.constant 0 : index
    %c0_3 = arith.constant 0 : index
    %c0_4 = arith.constant 0 : index
    %1 = vector.load %arg2[%c0_2, %c0_3, %c0_4] : memref<2x16x256xf32, #tpu.memory_space<vmem>>, vector<2x16x256xf32>
    %cst = arith.constant dense<0.000000e+00> : vector<2x16xf32>
    %2 = vector.multi_reduction <add>, %0, %cst [2] : vector<2x16x256xf32> to vector<2x16xf32>
    %cst_5 = arith.constant dense<0.000000e+00> : vector<2x16xf32>
    %3 = vector.multi_reduction <add>, %1, %cst_5 [2] : vector<2x16x256xf32> to vector<2x16xf32>
    %c0_6 = arith.constant 0 : index
    %c0_7 = arith.constant 0 : index
    %4 = vector.load %arg3[%c0_6, %c0_7] : memref<16x4xf32, #tpu.memory_space<vmem>>, vector<16x4xf32>
    %cst_8 = arith.constant dense<0.000000e+00> : vector<2x4xf32>
    %5 = tpu.matmul %2, %4, %cst_8 {dimension_numbers = #tpu.dot_dimension_numbers<[1], [0], [0], [1], [0, 0, 1, 1], [], []>} : vector<2x16xf32>, vector<16x4xf32>, vector<2x4xf32> -> vector<2x4xf32>
    %c0_9 = arith.constant 0 : index
    %c0_10 = arith.constant 0 : index
    %6 = vector.load %arg4[%c0_9, %c0_10] : memref<16x4xf32, #tpu.memory_space<vmem>>, vector<16x4xf32>
    %cst_11 = arith.constant dense<0.000000e+00> : vector<2x4xf32>
    %7 = tpu.matmul %3, %6, %cst_11 {dimension_numbers = #tpu.dot_dimension_numbers<[1], [0], [0], [1], [0, 0, 1, 1], [], []>} : vector<2x16xf32>, vector<16x4xf32>, vector<2x4xf32> -> vector<2x4xf32>
    %8 = arith.addf %5, %7 : vector<2x4xf32>
    %c0_12 = arith.constant 0 : index
    %c0_13 = arith.constant 0 : index
    %9 = vector.load %arg5[%c0_12, %c0_13] : memref<1x4xf32, #tpu.memory_space<vmem>>, vector<1x4xf32>
    %10 = vector.broadcast %9 : vector<1x4xf32> to vector<2x4xf32>
    %11 = arith.addf %8, %10 : vector<2x4xf32>
    %cst_14 = arith.constant 0.000000e+00 : f32
    %12 = vector.broadcast %cst_14 : f32 to vector<2x4xf32>
    %13 = arith.maximumf %11, %12 : vector<2x4xf32>
    %c0_15 = arith.constant 0 : index
    %c0_16 = arith.constant 0 : index
    %14 = vector.load %arg6[%c0_15, %c0_16] : memref<4x16xf32, #tpu.memory_space<vmem>>, vector<4x16xf32>
    %cst_17 = arith.constant dense<0.000000e+00> : vector<2x16xf32>
    %15 = tpu.matmul %13, %14, %cst_17 {dimension_numbers = #tpu.dot_dimension_numbers<[1], [0], [0], [1], [0, 0, 1, 1], [], []>} : vector<2x4xf32>, vector<4x16xf32>, vector<2x16xf32> -> vector<2x16xf32>
    %c0_18 = arith.constant 0 : index
    %c0_19 = arith.constant 0 : index
    %16 = vector.load %arg7[%c0_18, %c0_19] : memref<1x16xf32, #tpu.memory_space<vmem>>, vector<1x16xf32>
    %17 = vector.broadcast %16 : vector<1x16xf32> to vector<2x16xf32>
    %18 = arith.addf %15, %17 : vector<2x16xf32>
    %19 = arith.negf %18 : vector<2x16xf32>
    %20 = math.exp %19 : vector<2x16xf32>
    %cst_20 = arith.constant 1.000000e+00 : f32
    %21 = vector.broadcast %cst_20 : f32 to vector<2x16xf32>
    %22 = arith.addf %21, %20 : vector<2x16xf32>
    %23 = arith.divf %21, %22 : vector<2x16xf32>
    %24 = vector.shape_cast %23 : vector<2x16xf32> to vector<2x16x1xf32>
    %25 = arith.subf %0, %1 : vector<2x16x256xf32>
    %26 = vector.broadcast %24 : vector<2x16x1xf32> to vector<2x16x256xf32>
    %27 = arith.mulf %26, %25 : vector<2x16x256xf32>
    %28 = arith.addf %1, %27 : vector<2x16x256xf32>
    %c0_21 = arith.constant 0 : index
    %c0_22 = arith.constant 0 : index
    %c0_23 = arith.constant 0 : index
    %29 = vector.load %arg8[%c0_21, %c0_22, %c0_23] : memref<2x16x256xf32, #tpu.memory_space<vmem>>, vector<2x16x256xf32>
    tpu.vector_store %arg8[%c0_21, %c0_22, %c0_23], %28 {strides = array<i32>} : memref<2x16x256xf32, #tpu.memory_space<vmem>>, vector<2x16x256xf32>,
    return
  }
  func.func @transform_0(%arg0: i32) -> (i32, i32, i32) {
    %c0_i32 = arith.constant 0 : i32
    %c0_i32_0 = arith.constant 0 : i32
    %c0_i32_1 = arith.constant 0 : i32
    return %arg0, %c0_i32, %c0_i32_0 : i32, i32, i32
  }
  func.func @transform_1(%arg0: i32) -> (i32, i32, i32) {
    %c0_i32 = arith.constant 0 : i32
    %c0_i32_0 = arith.constant 0 : i32
    %c0_i32_1 = arith.constant 0 : i32
    return %arg0, %c0_i32, %c0_i32_0 : i32, i32, i32
  }
  func.func @transform_2(%arg0: i32) -> (i32, i32) {
    %c0_i32 = arith.constant 0 : i32
    %c0_i32_0 = arith.constant 0 : i32
    %c0_i32_1 = arith.constant 0 : i32
    return %c0_i32, %c0_i32_0 : i32, i32
  }
  func.func @transform_3(%arg0: i32) -> (i32, i32) {
    %c0_i32 = arith.constant 0 : i32
    %c0_i32_0 = arith.constant 0 : i32
    %c0_i32_1 = arith.constant 0 : i32
    return %c0_i32, %c0_i32_0 : i32, i32
  }
  func.func @transform_4(%arg0: i32) -> (i32, i32) {
    %c0_i32 = arith.constant 0 : i32
    %c0_i32_0 = arith.constant 0 : i32
    %c0_i32_1 = arith.constant 0 : i32
    return %c0_i32, %c0_i32_0 : i32, i32
  }
  func.func @transform_5(%arg0: i32) -> (i32, i32) {
    %c0_i32 = arith.constant 0 : i32
    %c0_i32_0 = arith.constant 0 : i32
    %c0_i32_1 = arith.constant 0 : i32
    return %c0_i32, %c0_i32_0 : i32, i32
  }
  func.func @transform_6(%arg0: i32) -> (i32, i32) {
    %c0_i32 = arith.constant 0 : i32
    %c0_i32_0 = arith.constant 0 : i32
    %c0_i32_1 = arith.constant 0 : i32
    return %c0_i32, %c0_i32_0 : i32, i32
  }
  func.func @transform_7(%arg0: i32) -> (i32, i32, i32) {
    %c0_i32 = arith.constant 0 : i32
    %c0_i32_0 = arith.constant 0 : i32
    %c0_i32_1 = arith.constant 0 : i32
    return %arg0, %c0_i32, %c0_i32_0 : i32, i32, i32
  }
}

</mosaic_0001>

<llo_original>
// kernel: tpu_custom_call.1
$region0: #{tpu_custom_call.1}
  #allocation0 [shape = 'u32[]', space=smem, size = 0x4, offset = 0x4, fixed_abs, tag = 'smem constant byte address 0x4 - core index']
  #allocation1 [shape = 'u32[144,128]{1,0:T(1,128)}', space=vmem, size = 0x12000, scoped, tag = 'internal scratch']
  %s0 = inlined_call_operand.hbm [shape: f32[2,16,256], index: 0, kind: input, shape index: {}]
  %s1 = inlined_call_operand.hbm [shape: f32[2,16,256], index: 1, kind: input, shape index: {}]
  %s2 = inlined_call_operand.vmem [shape: f32[16,4], index: 2, kind: input, shape index: {}]
  %s3 = inlined_call_operand.vmem [shape: f32[16,4], index: 3, kind: input, shape index: {}]
  %s4 = inlined_call_operand.vmem [shape: f32[1,4], index: 4, kind: input, shape index: {}]
  %s5 = inlined_call_operand.vmem [shape: f32[4,16], index: 5, kind: input, shape index: {}]
  %s6 = inlined_call_operand.vmem [shape: f32[1,16], index: 6, kind: input, shape index: {}]
  %s7 = inlined_call_operand.hbm [shape: f32[2,16,256], index: 7, kind: output, shape index: {}]
  %s8 = sld [smem:[#allocation0]]
  $region46: #{tpu_custom_call.1} parent=0
    _
  %s10 = ssub.s32 1, %s8
  %s11 = scalar_select 0, %s10, %s8
  $region1: #{tpu_custom_call.1} parent=0
    #allocation2 [shape = 'u8[32768]{0}', space=vmem, size = 0x8000, scoped, tag = 'input window, operand 0, single buffered']
    #allocation3 [shape = 's32[1]{0}', space=sflag, size = 0x4, scoped, tag = 'scoped memory for tpu_custom_call.1']
    #allocation4 [shape = 's32[1]{0}', space=sflag, size = 0x4, scoped, tag = 'scoped memory for tpu_custom_call.1']
    #allocation5 [shape = 'u8[32768]{0}', space=vmem, size = 0x8000, scoped, tag = 'input window, operand 1, single buffered']
    #allocation6 [shape = 's32[1]{0}', space=sflag, size = 0x4, scoped, tag = 'scoped memory for tpu_custom_call.1']
    #allocation7 [shape = 'u8[32768]{0}', space=vmem, size = 0x8000, scoped, tag = 'output window, operand 0, single buffered']
    %12 = vsyncpa [#allocation3], 0
    %13 = vsyncpa [#allocation6], 0
    %14 = vsyncpa [#allocation4], 0
    // Predicated region
    $region2: #{tpu_custom_call.1} parent=1 // pred_check
      _
    $region3: #{tpu_custom_call.1} parent=1 // pred_check_branch
      %16 = sbr.rel (0) target = $region5
    $region4: #{tpu_custom_call.1} parent=1 // pred_region
      %s18 = ssub.s32 1024, 1024
      %19 = vsyncadd [#allocation3], %s18
      %s20 = sshll.u32 [#allocation2], 4
      %s21 = int_to_ptr.vmem [resolvable:$true] %s20
      %26 = dma.hbm_to_vmem [thread:$0]  %s0, 1024, %s21, [#allocation3], 256, 256, 16
    $region5: #{tpu_custom_call.1} parent=1 // pred_fallthru
      _
    // Predicated region
    $region6: #{tpu_custom_call.1} parent=1 // pred_check
      _
    $region7: #{tpu_custom_call.1} parent=1 // pred_check_branch
      %28 = sbr.rel (0) target = $region9
    $region8: #{tpu_custom_call.1} parent=1 // pred_region
      %s30 = ssub.s32 1024, 1024
      %31 = vsyncadd [#allocation6], %s30
      %s32 = sshll.u32 [#allocation5], 4
      %s33 = int_to_ptr.vmem [resolvable:$true] %s32
      %38 = dma.hbm_to_vmem [thread:$0]  %s1, 1024, %s33, [#allocation6], 256, 256, 16
    $region9: #{tpu_custom_call.1} parent=1 // pred_fallthru
      _
    // Predicated region
    $region10: #{tpu_custom_call.1} parent=1 // pred_check
      _
    $region11: #{tpu_custom_call.1} parent=1 // pred_check_branch
      %40 = sbr.rel (0) target = $region13
    $region12: #{tpu_custom_call.1} parent=1 // pred_region
      _
    $region13: #{tpu_custom_call.1} parent=1 // pred_fallthru
      _
    // Predicated region
    $region14: #{tpu_custom_call.1} parent=1 // pred_check
      _
    $region15: #{tpu_custom_call.1} parent=1 // pred_check_branch
      %42 = sbr.rel (0) target = $region17
    $region16: #{tpu_custom_call.1} parent=1 // pred_region
      _
    $region17: #{tpu_custom_call.1} parent=1 // pred_fallthru
      _
    // Predicated region
    $region18: #{tpu_custom_call.1} parent=1 // pred_check
      _
    $region19: #{tpu_custom_call.1} parent=1 // pred_check_branch
      %44 = sbr.rel (0) target = $region21
    $region20: #{tpu_custom_call.1} parent=1 // pred_region
      _
    $region21: #{tpu_custom_call.1} parent=1 // pred_fallthru
      _
    // Predicated region
    $region22: #{tpu_custom_call.1} parent=1 // pred_check
      _
    $region23: #{tpu_custom_call.1} parent=1 // pred_check_branch
      %46 = sbr.rel (0) target = $region25
    $region24: #{tpu_custom_call.1} parent=1 // pred_region
      _
    $region25: #{tpu_custom_call.1} parent=1 // pred_fallthru
      _
    // Predicated region
    $region26: #{tpu_custom_call.1} parent=1 // pred_check
      _
    $region27: #{tpu_custom_call.1} parent=1 // pred_check_branch
      %48 = sbr.rel (0) target = $region29
    $region28: #{tpu_custom_call.1} parent=1 // pred_region
      _
    $region29: #{tpu_custom_call.1} parent=1 // pred_fallthru
      _
    // Predicated region
    $region30: #{tpu_custom_call.1} parent=1 // pred_check
      _
    $region31: #{tpu_custom_call.1} parent=1 // pred_check_branch
      %50 = sbr.rel (0) target = $region33
    $region32: #{tpu_custom_call.1} parent=1 // pred_region
      %51 = dma.done [#allocation3], 1024
    $region33: #{tpu_custom_call.1} parent=1 // pred_fallthru
      _
    // Predicated region
    $region34: #{tpu_custom_call.1} parent=1 // pred_check
      _
    $region35: #{tpu_custom_call.1} parent=1 // pred_check_branch
      %53 = sbr.rel (0) target = $region37
    $region36: #{tpu_custom_call.1} parent=1 // pred_region
      %54 = dma.done [#allocation6], 1024
    $region37: #{tpu_custom_call.1} parent=1 // pred_fallthru
      _
    %v55 = vld [vmem:[#allocation2] sm:$0xff]
    %v56 = vld [vmem:[#allocation2 + $0x8] sm:$0xff]
    %v57 = vld [vmem:[#allocation2 + $0x10] sm:$0xff]
    %v58 = vld [vmem:[#allocation2 + $0x18] sm:$0xff]
    %v59 = vld [vmem:[#allocation2 + $0x20] sm:$0xff]
    %v60 = vld [vmem:[#allocation2 + $0x28] sm:$0xff]
    %v61 = vld [vmem:[#allocation2 + $0x30] sm:$0xff]
    %v62 = vld [vmem:[#allocation2 + $0x38] sm:$0xff]
    %v63 = vld [vmem:[#allocation5] sm:$0xff]
    %v64 = vld [vmem:[#allocation5 + $0x8] sm:$0xff]
    %v65 = vld [vmem:[#allocation5 + $0x10] sm:$0xff]
    %v66 = vld [vmem:[#allocation5 + $0x18] sm:$0xff]
    %v67 = vld [vmem:[#allocation5 + $0x20] sm:$0xff]
    %v68 = vld [vmem:[#allocation5 + $0x28] sm:$0xff]
    %v69 = vld [vmem:[#allocation5 + $0x30] sm:$0xff]
    %v70 = vld [vmem:[#allocation5 + $0x38] sm:$0xff]
    %v71 = vadd.f32 %v55, %v56
    %72 = vadd.xlane.f32.xlu0 %v71
    %v73 = vpop.xlane.xlu0 %72
    %v74 = vadd.f32 %v57, %v58
    %75 = vadd.xlane.f32.xlu0 %v74
    %v76 = vpop.xlane.xlu0 %75
    %v77 = vadd.f32 %v59, %v60
    %78 = vadd.xlane.f32.xlu0 %v77
    %v79 = vpop.xlane.xlu0 %78
    %v80 = vadd.f32 %v61, %v62
    %81 = vadd.xlane.f32.xlu0 %v80
    %v82 = vpop.xlane.xlu0 %81
    %v83 = vadd.f32 %v63, %v64
    %84 = vadd.xlane.f32.xlu0 %v83
    %v85 = vpop.xlane.xlu0 %84
    %v86 = vadd.f32 %v65, %v66
    %87 = vadd.xlane.f32.xlu0 %v86
    %v88 = vpop.xlane.xlu0 %87
    %v89 = vadd.f32 %v67, %v68
    %90 = vadd.xlane.f32.xlu0 %v89
    %v91 = vpop.xlane.xlu0 %90
    %v92 = vadd.f32 %v69, %v70
    %93 = vadd.xlane.f32.xlu0 %v92
    %v94 = vpop.xlane.xlu0 %93
    %v95 = vld [vmem:[%s2] sm:$0xff]
    %v96 = vld [vmem:[%s2 + $0x8] sm:$0xff]
    %v97 = vld [vmem:[%s3] sm:$0xff]
    %v98 = vld [vmem:[%s3 + $0x8] sm:$0xff]
    %v103 = vlaneseq
    %v104 = vand.u32 %v103, 127
    %v105 = vlaneseq
    %v106 = vshrl.u32 %v105, 7
    %v107 = vsub.s32 %v104, %v106
    %v108 = vrot.slane %v85, %v107
    %v109 = vadd.s32 %v104, 4294967288
    %v110 = vlaneseq
    %v111 = vshrl.u32 %v110, 7
    %v112 = vsub.s32 %v109, %v111
    %v113 = vrot.slane %v88, %v112
    %vm114 = vcmask 130112
    %v115 = vsel %vm114, %v113, %v108
    %v116 = vlaneseq
    %v117 = vshrl.u32 %v116, 7
    %v118 = vsub.s32 %v104, %v117
    %v119 = vrot.slane %v91, %v118
    %v120 = vlaneseq
    %v121 = vshrl.u32 %v120, 7
    %v122 = vsub.s32 %v109, %v121
    %v123 = vrot.slane %v94, %v122
    %v124 = vsel %vm114, %v123, %v119
    %vm125 = vcmask 1041409
    %v126 = vsel %vm125, %v124, %v115
    %vm127 = vcmask 130048
    %v128 = vsel %vm127, %v126, 0
    %130 = vmatprep.subr.mxu0 0.0
    %131 = vmatpush1.msra.mxu0 %v97
    %132 = vmatprep.subr.mxu0 0.0
    %133 = vmatpush1.msra.mxu0 %v98
    %134 = vmatprep.subr.mxu0 0.0
    %135 = vmatpush1.msra.mxu0 0.0
    %136 = vmatprep.subr.mxu0 0.0
    %137 = vmatpush1.msra.mxu0 0.0
    %138 = vmatprep.subr.mxu0 0.0
    %139 = vmatpush1.msra.mxu0 0.0
    %140 = vmatprep.subr.mxu0 0.0
    %141 = vmatpush1.msra.mxu0 0.0
    %142 = vmatprep.subr.mxu0 0.0
    %143 = vmatpush1.msra.mxu0 0.0
    %144 = vmatprep.subr.mxu0 0.0
    %145 = vmatpush1.msra.mxu0 0.0
    %146 = vmatprep.subr.mxu0 0.0
    %147 = vmatpush1.msra.mxu0 0.0
    %148 = vmatprep.subr.mxu0 0.0
    %149 = vmatpush1.msra.mxu0 0.0
    %150 = vmatprep.subr.mxu0 0.0
    %151 = vmatpush1.msra.mxu0 0.0
    %152 = vmatprep.subr.mxu0 0.0
    %153 = vmatpush1.msra.mxu0 0.0
    %154 = vmatprep.subr.mxu0 0.0
    %155 = vmatpush1.msra.mxu0 0.0
    %156 = vmatprep.subr.mxu0 0.0
    %157 = vmatpush1.msra.mxu0 0.0
    %158 = vmatprep.subr.mxu0 0.0
    %159 = vmatpush1.msra.mxu0 0.0
    %160 = vmatprep.subr.mxu0 0.0
    %161 = vmatpush1.msra.mxu0 0.0
    %162 = vmatprep.subr.mxu0 0.0
    %163 = vmatpush1.msra.mxu0 0.0
    %164 = vmatprep.subr.mxu0 0.0
    %165 = vmatpush1.msra.mxu0 0.0
    %166 = vmatprep.subr.mxu0 0.0
    %167 = vmatpush1.msra.mxu0 0.0
    %168 = vmatprep.subr.mxu0 0.0
    %169 = vmatpush1.msra.mxu0 0.0
    %170 = vmatprep.subr.mxu0 0.0
    %171 = vmatpush1.msra.mxu0 0.0
    %172 = vmatprep.subr.mxu0 0.0
    %173 = vmatpush1.msra.mxu0 0.0
    %174 = vmatprep.subr.mxu0 0.0
    %175 = vmatpush1.msra.mxu0 0.0
    %176 = vmatprep.subr.mxu0 0.0
    %177 = vmatpush1.msra.mxu0 0.0
    %178 = vmatprep.subr.mxu0 0.0
    %179 = vmatpush1.msra.mxu0 0.0
    %180 = vmatprep.subr.mxu0 0.0
    %181 = vmatpush1.msra.mxu0 0.0
    %182 = vmatprep.subr.mxu0 0.0
    %183 = vmatpush1.msra.mxu0 0.0
    %184 = vmatprep.subr.mxu0 0.0
    %185 = vmatpush1.msra.mxu0 0.0
    %186 = vmatprep.subr.mxu0 0.0
    %187 = vmatpush1.msra.mxu0 0.0
    %188 = vmatprep.subr.mxu0 0.0
    %189 = vmatpush1.msra.mxu0 0.0
    %190 = vmatprep.subr.mxu0 0.0
    %191 = vmatpush1.msra.mxu0 0.0
    %192 = vmatprep.subr.mxu0 0.0
    %193 = vmatpush1.msra.mxu0 0.0
    %194 = vmatprep.mubr.f32.mxu0 0.0
    %195 = vmatmul.mubr.f32.gmra.mrb[0].mxu0 %v128
    %v196 = vpop.f32.mrb[0].mxu0
    %v197 = vadd.f32 0.0, %v196
    %v198 = vpop.f32.mrb[0].mxu0
    %199 = vdwg.mxu0
    %v204 = vlaneseq
    %v205 = vshrl.u32 %v204, 7
    %v206 = vsub.s32 %v104, %v205
    %v207 = vrot.slane %v73, %v206
    %v208 = vlaneseq
    %v209 = vshrl.u32 %v208, 7
    %v210 = vsub.s32 %v109, %v209
    %v211 = vrot.slane %v76, %v210
    %v212 = vsel %vm114, %v211, %v207
    %v213 = vlaneseq
    %v214 = vshrl.u32 %v213, 7
    %v215 = vsub.s32 %v104, %v214
    %v216 = vrot.slane %v79, %v215
    %v217 = vlaneseq
    %v218 = vshrl.u32 %v217, 7
    %v219 = vsub.s32 %v109, %v218
    %v220 = vrot.slane %v82, %v219
    %v221 = vsel %vm114, %v220, %v216
    %v222 = vsel %vm125, %v221, %v212
    %v223 = vsel %vm127, %v222, 0
    %225 = vmatprep.subr.mxu0 0.0
    %226 = vmatpush1.msra.mxu0 %v95
    %227 = vmatprep.subr.mxu0 0.0
    %228 = vmatpush1.msra.mxu0 %v96
    %229 = vmatprep.subr.mxu0 0.0
    %230 = vmatpush1.msra.mxu0 0.0
    %231 = vmatprep.subr.mxu0 0.0
    %232 = vmatpush1.msra.mxu0 0.0
    %233 = vmatprep.subr.mxu0 0.0
    %234 = vmatpush1.msra.mxu0 0.0
    %235 = vmatprep.subr.mxu0 0.0
    %236 = vmatpush1.msra.mxu0 0.0
    %237 = vmatprep.subr.mxu0 0.0
    %238 = vmatpush1.msra.mxu0 0.0
    %239 = vmatprep.subr.mxu0 0.0
    %240 = vmatpush1.msra.mxu0 0.0
    %241 = vmatprep.subr.mxu0 0.0
    %242 = vmatpush1.msra.mxu0 0.0
    %243 = vmatprep.subr.mxu0 0.0
    %244 = vmatpush1.msra.mxu0 0.0
    %245 = vmatprep.subr.mxu0 0.0
    %246 = vmatpush1.msra.mxu0 0.0
    %247 = vmatprep.subr.mxu0 0.0
    %248 = vmatpush1.msra.mxu0 0.0
    %249 = vmatprep.subr.mxu0 0.0
    %250 = vmatpush1.msra.mxu0 0.0
    %251 = vmatprep.subr.mxu0 0.0
    %252 = vmatpush1.msra.mxu0 0.0
    %253 = vmatprep.subr.mxu0 0.0
    %254 = vmatpush1.msra.mxu0 0.0
    %255 = vmatprep.subr.mxu0 0.0
    %256 = vmatpush1.msra.mxu0 0.0
    %257 = vmatprep.subr.mxu0 0.0
    %258 = vmatpush1.msra.mxu0 0.0
    %259 = vmatprep.subr.mxu0 0.0
    %260 = vmatpush1.msra.mxu0 0.0
    %261 = vmatprep.subr.mxu0 0.0
    %262 = vmatpush1.msra.mxu0 0.0
    %263 = vmatprep.subr.mxu0 0.0
    %264 = vmatpush1.msra.mxu0 0.0
    %265 = vmatprep.subr.mxu0 0.0
    %266 = vmatpush1.msra.mxu0 0.0
    %267 = vmatprep.subr.mxu0 0.0
    %268 = vmatpush1.msra.mxu0 0.0
    %269 = vmatprep.subr.mxu0 0.0
    %270 = vmatpush1.msra.mxu0 0.0
    %271 = vmatprep.subr.mxu0 0.0
    %272 = vmatpush1.msra.mxu0 0.0
    %273 = vmatprep.subr.mxu0 0.0
    %274 = vmatpush1.msra.mxu0 0.0
    %275 = vmatprep.subr.mxu0 0.0
    %276 = vmatpush1.msra.mxu0 0.0
    %277 = vmatprep.subr.mxu0 0.0
    %278 = vmatpush1.msra.mxu0 0.0
    %279 = vmatprep.subr.mxu0 0.0
    %280 = vmatpush1.msra.mxu0 0.0
    %281 = vmatprep.subr.mxu0 0.0
    %282 = vmatpush1.msra.mxu0 0.0
    %283 = vmatprep.subr.mxu0 0.0
    %284 = vmatpush1.msra.mxu0 0.0
    %285 = vmatprep.subr.mxu0 0.0
    %286 = vmatpush1.msra.mxu0 0.0
    %287 = vmatprep.subr.mxu0 0.0
    %288 = vmatpush1.msra.mxu0 0.0
    %289 = vmatprep.mubr.f32.mxu0 0.0
    %290 = vmatmul.mubr.f32.gmra.mrb[0].mxu0 %v223
    %v291 = vpop.f32.mrb[0].mxu0
    %v292 = vadd.f32 %v197, %v291
    %v293 = vpop.f32.mrb[0].mxu0
    %294 = vdwg.mxu0
    %v295 = vld [vmem:[%s4] sm:$0x1]
    %v297 = vlaneseq
    %v298 = vshrl.u32 %v297, 7
    %v299 = vsub.s32 0, %v298
    %v300 = vrot.slane %v295, %v299
    %v302 = vadd.f32 %v292, %v300
    %v303 = vmax.f32 %v302, 0.0
    %v304 = vld [vmem:[%s5] sm:$0xf]
    %v305 = vld [vmem:[%s6] sm:$0x1]
    %v307 = vlaneseq
    %v308 = vshrl.u32 %v307, 7
    %v309 = vsub.s32 0, %v308
    %v310 = vrot.slane %v305, %v309
    %vm312 = vcmask 31744
    %v314 = vsel %vm312, %v303, 0
    %vm316 = vcmask 1043456
    %v318 = vsel %vm316, %v304, 0
    %320 = vmatprep.subr.mxu0 0.0
    %321 = vmatpush1.msra.mxu0 %v318
    %322 = vmatprep.subr.mxu0 0.0
    %323 = vmatpush1.msra.mxu0 0.0
    %324 = vmatprep.subr.mxu0 0.0
    %325 = vmatpush1.msra.mxu0 0.0
    %326 = vmatprep.subr.mxu0 0.0
    %327 = vmatpush1.msra.mxu0 0.0
    %328 = vmatprep.subr.mxu0 0.0
    %329 = vmatpush1.msra.mxu0 0.0
    %330 = vmatprep.subr.mxu0 0.0
    %331 = vmatpush1.msra.mxu0 0.0
    %332 = vmatprep.subr.mxu0 0.0
    %333 = vmatpush1.msra.mxu0 0.0
    %334 = vmatprep.subr.mxu0 0.0
    %335 = vmatpush1.msra.mxu0 0.0
    %336 = vmatprep.subr.mxu0 0.0
    %337 = vmatpush1.msra.mxu0 0.0
    %338 = vmatprep.subr.mxu0 0.0
    %339 = vmatpush1.msra.mxu0 0.0
    %340 = vmatprep.subr.mxu0 0.0
    %341 = vmatpush1.msra.mxu0 0.0
    %342 = vmatprep.subr.mxu0 0.0
    %343 = vmatpush1.msra.mxu0 0.0
    %344 = vmatprep.subr.mxu0 0.0
    %345 = vmatpush1.msra.mxu0 0.0
    %346 = vmatprep.subr.mxu0 0.0
    %347 = vmatpush1.msra.mxu0 0.0
    %348 = vmatprep.subr.mxu0 0.0
    %349 = vmatpush1.msra.mxu0 0.0
    %350 = vmatprep.subr.mxu0 0.0
    %351 = vmatpush1.msra.mxu0 0.0
    %352 = vmatprep.subr.mxu0 0.0
    %353 = vmatpush1.msra.mxu0 0.0
    %354 = vmatprep.subr.mxu0 0.0
    %355 = vmatpush1.msra.mxu0 0.0
    %356 = vmatprep.subr.mxu0 0.0
    %357 = vmatpush1.msra.mxu0 0.0
    %358 = vmatprep.subr.mxu0 0.0
    %359 = vmatpush1.msra.mxu0 0.0
    %360 = vmatprep.subr.mxu0 0.0
    %361 = vmatpush1.msra.mxu0 0.0
    %362 = vmatprep.subr.mxu0 0.0
    %363 = vmatpush1.msra.mxu0 0.0
    %364 = vmatprep.subr.mxu0 0.0
    %365 = vmatpush1.msra.mxu0 0.0
    %366 = vmatprep.subr.mxu0 0.0
    %367 = vmatpush1.msra.mxu0 0.0
    %368 = vmatprep.subr.mxu0 0.0
    %369 = vmatpush1.msra.mxu0 0.0
    %370 = vmatprep.subr.mxu0 0.0
    %371 = vmatpush1.msra.mxu0 0.0
    %372 = vmatprep.subr.mxu0 0.0
    %373 = vmatpush1.msra.mxu0 0.0
    %374 = vmatprep.subr.mxu0 0.0
    %375 = vmatpush1.msra.mxu0 0.0
    %376 = vmatprep.subr.mxu0 0.0
    %377 = vmatpush1.msra.mxu0 0.0
    %378 = vmatprep.subr.mxu0 0.0
    %379 = vmatpush1.msra.mxu0 0.0
    %380 = vmatprep.subr.mxu0 0.0
    %381 = vmatpush1.msra.mxu0 0.0
    %382 = vmatprep.subr.mxu0 0.0
    %383 = vmatpush1.msra.mxu0 0.0
    %384 = vmatprep.mubr.f32.mxu0 0.0
    %385 = vmatmul.mubr.f32.gmra.mrb[0].mxu0 %v314
    %v386 = vpop.f32.mrb[0].mxu0
    %v387 = vadd.f32 %v310, %v386
    %v388 = vpop.f32.mrb[0].mxu0
    %389 = vdwg.mxu0
    %v390 = vxor.u32 %v387, 2147483648
    %v391 = vmul.f32 %v390, 1.442695
    %v392 = vpow.pop %v391
    %v393 = vadd.f32 %v392, 1.0
    %v394 = vrcp.pop %v393
    %v395 = vmul.f32 1.0, %v394
    %v396 = vlaneseq
    %v397 = vshrl.u32 %v396, 7
    %v398 = vsub.s32 0, %v397
    %v399 = vrot.slane %v395, %v398
    %401 = vbcast.lane.b32.xlu0 %v399, 256
    %v402 = vpop.permute.xlu0 %401
    %s404 = sor.u32 256, 8
    %405 = vbcast.lane.b32.xlu0 %v399, %s404
    %v406 = vpop.permute.xlu0 %405
    %v407 = vlaneseq
    %v408 = vshrl.u32 %v407, 7
    %v409 = vsub.s32 1, %v408
    %v410 = vrot.slane %v395, %v409
    %412 = vbcast.lane.b32.xlu0 %v410, 256
    %v413 = vpop.permute.xlu0 %412
    %s415 = sor.u32 256, 8
    %416 = vbcast.lane.b32.xlu0 %v410, %s415
    %v417 = vpop.permute.xlu0 %416
    %v418 = vsub.f32 %v55, %v63
    %v419 = vsub.f32 %v56, %v64
    %v420 = vsub.f32 %v57, %v65
    %v421 = vsub.f32 %v58, %v66
    %v422 = vsub.f32 %v59, %v67
    %v423 = vsub.f32 %v60, %v68
    %v424 = vsub.f32 %v61, %v69
    %v425 = vsub.f32 %v62, %v70
    %v426 = vmul.f32 %v402, %v418
    %v427 = vmul.f32 %v402, %v419
    %v428 = vmul.f32 %v406, %v420
    %v429 = vmul.f32 %v406, %v421
    %v430 = vmul.f32 %v413, %v422
    %v431 = vmul.f32 %v413, %v423
    %v432 = vmul.f32 %v417, %v424
    %v433 = vmul.f32 %v417, %v425
    %v434 = vadd.f32 %v63, %v426
    %v435 = vadd.f32 %v64, %v427
    %v436 = vadd.f32 %v65, %v428
    %v437 = vadd.f32 %v66, %v429
    %v438 = vadd.f32 %v67, %v430
    %v439 = vadd.f32 %v68, %v431
    %v440 = vadd.f32 %v69, %v432
    %v441 = vadd.f32 %v70, %v433
    %442 = vst [vmem:[#allocation7] sm:$0xff] %v434
    %443 = vst [vmem:[#allocation7 + $0x8] sm:$0xff] %v435
    %444 = vst [vmem:[#allocation7 + $0x10] sm:$0xff] %v436
    %445 = vst [vmem:[#allocation7 + $0x18] sm:$0xff] %v437
    %446 = vst [vmem:[#allocation7 + $0x20] sm:$0xff] %v438
    %447 = vst [vmem:[#allocation7 + $0x28] sm:$0xff] %v439
    %448 = vst [vmem:[#allocation7 + $0x30] sm:$0xff] %v440
    %449 = vst [vmem:[#allocation7 + $0x38] sm:$0xff] %v441
    // Predicated region
    $region38: #{tpu_custom_call.1} parent=1 // pred_check
      _
    $region39: #{tpu_custom_call.1} parent=1 // pred_check_branch
      %451 = sbr.rel (0) target = $region41
    $region40: #{tpu_custom_call.1} parent=1 // pred_region
      %s453 = ssub.s32 1024, 1024
      %454 = vsyncadd [#allocation4], %s453
      %s455 = sshll.u32 [#allocation7], 4
      %s456 = int_to_ptr.vmem [resolvable:$true] %s455
      %461 = dma.vmem_to_hbm [thread:$0]  %s456, 1024, %s7, [#allocation4], 256, 256, 16
    $region41: #{tpu_custom_call.1} parent=1 // pred_fallthru
      _
    // Predicated region
    $region42: #{tpu_custom_call.1} parent=1 // pred_check
      _
    $region43: #{tpu_custom_call.1} parent=1 // pred_check_branch
      %463 = sbr.rel (0) target = $region45
    $region44: #{tpu_custom_call.1} parent=1 // pred_region
      %464 = dma.done [#allocation4], 1024
    $region45: #{tpu_custom_call.1} parent=1 // pred_fallthru
      _
    %465 = vsyncpa [#allocation3], 1
    %466 = vsyncpa [#allocation6], 1
    %467 = vsyncpa [#allocation4], 1

</llo_original>
